<compile_context>
chip_gen: v7x
topology: tpu7x:2x2x1
jax: 0.10.0
libtpu: 0.0.40
codegen_flags: <defaults>
</compile_context>

<pallas_src>
import jax
import jax.numpy as jnp
from jax.experimental import pallas as pl
from jax.experimental.pallas import tpu as pltpu


def _round_up(x, m):
    return ((x + m - 1) // m) * m


def lstm_tagger_kernel(sent_ref, emb_ref, w_ih_ref, w_hh_ref, b_ref,
                       w_tag_ref, b_tag_ref, out_ref, x_proj_scr):
    """Fused embedding gather + LSTM recurrence + tag projection.

    sent_ref   : (T,)       int32  SMEM  token ids
    emb_ref    : (V, E)     f32   VMEM  embedding table
    w_ih_ref   : (E, G4)    f32   VMEM  transpose of torch weight_ih_l0 (gate axis padded to G4)
    w_hh_ref   : (H, G4)    f32   VMEM  transpose of torch weight_hh_l0 (no contraction-dim padding)
    b_ref      : (1, G4)    f32   VMEM  bias_ih + bias_hh
    w_tag_ref  : (H, TGP)   f32   VMEM  transpose of hidden2tag.weight, zero-padded cols >= Tg
    b_tag_ref  : (1, TGP)   f32   VMEM  zero-padded lanes >= Tg
    out_ref    : (T, TGP)   f32   VMEM  padded tag_space (caller slices [:, :Tg])
    x_proj_scr : (T, G4)    f32   VMEM  scratch for the hoisted input projection

    Gate order is PyTorch's [i, f, g, o]; each block is H lanes wide.
    """
    T = out_ref.shape[0]
    H = w_hh_ref.shape[0]

    # ---- Fused embedding gather: dynamic sublane row loads from the tiny
    # vocab table, indices read as scalars from SMEM.  Off the serial path.
    rows = [emb_ref[pl.ds(sent_ref[t], 1), :] for t in range(T)]
    embeds = jnp.concatenate(rows, axis=0)                          # (T, E)

    # ---- Hoisted input projection + bias: ONE (T,E)@(E,G4) matmul, spilled to
    # a small VMEM scratch so each unrolled step does a cheap static row vld
    # instead of extracting sublanes from a long-lived register value.
    x_proj_scr[...] = (jnp.dot(embeds, w_ih_ref[...],
                               preferred_element_type=jnp.float32)
                       + b_ref[...])                                # (T, G4)

    # init_hidden(): zeros.
    h = jnp.zeros((1, H), jnp.float32)
    c = jnp.zeros((1, H), jnp.float32)

    # ---- Fully unrolled recurrence; only h @ W_hh is sequential.  W_hh is
    # read from VMEM inside the dot each step (not held as a live value).
    h_rows = []
    for t in range(T):
        gates = x_proj_scr[pl.ds(t, 1), :] + jnp.dot(
            h, w_hh_ref[...], preferred_element_type=jnp.float32)  # (1, G4)

        # Whole-vreg non-linearities on the packed gates (2 EUP launches),
        # then static-offset lane slices per gate block.
        sig = jax.nn.sigmoid(gates)
        tnh = jnp.tanh(gates)
        i_g = sig[:, 0 * H:1 * H]
        f_g = sig[:, 1 * H:2 * H]
        g_g = tnh[:, 2 * H:3 * H]
        o_g = sig[:, 3 * H:4 * H]

        c = f_g * c + i_g * g_g
        h = o_g * jnp.tanh(c)
        h_rows.append(h)

    # ---- Deferred hidden2tag: stack the T hidden rows (one f32 sublane tile),
    # ONE lane-dense matmul, ONE contiguous slab store.
    hs = jnp.concatenate(h_rows, axis=0)                            # (T, H)
    out_ref[...] = (jnp.dot(hs, w_tag_ref[...],
                            preferred_element_type=jnp.float32)
                    + b_tag_ref[...])


def lstm_tagger_forward(sentence, emb_table, w_ih, w_hh, b, w_tag, b_tag):
    """Forward pass of LSTMTagger, fully fused into one Pallas kernel.

    w_ih : (E, 4H)  transpose of torch weight_ih_l0
    w_hh : (H, 4H)  transpose of torch weight_hh_l0
    b    : (1, 4H)  bias_ih + bias_hh
    w_tag: (H, Tg)  transpose of torch hidden2tag.weight
    b_tag: (1, Tg)
    """
    T = sentence.shape[0]
    H = w_hh.shape[0]
    four_h = w_hh.shape[1]
    Tg = w_tag.shape[1]

    G4 = _round_up(four_h, 128)    # gate-axis lane width (128 for H=32: no padding)
    TGP = _round_up(Tg, 128)       # lane-dense output width

    def pad_cols(m, width):
        out = jnp.zeros((m.shape[0], width), jnp.float32)
        return out.at[:, :m.shape[1]].set(m.astype(jnp.float32))

    w_ih_p = pad_cols(w_ih, G4)        # (E, G4)
    w_hh_p = pad_cols(w_hh, G4)        # (H, G4)  -- contraction dim H left unpadded
    b_p = pad_cols(b, G4)              # (1, G4)
    w_tag_p = pad_cols(w_tag, TGP)     # (H, TGP) -- padded cols are zero
    b_tag_p = pad_cols(b_tag, TGP)     # (1, TGP) -- padded lanes are zero

    vmem = pl.BlockSpec(memory_space=pltpu.MemorySpace.VMEM)
    smem = pl.BlockSpec(memory_space=pltpu.MemorySpace.SMEM)

    out_padded = pl.pallas_call(
        lstm_tagger_kernel,
        out_shape=jax.ShapeDtypeStruct((T, TGP), jnp.float32),
        in_specs=[smem, vmem, vmem, vmem, vmem, vmem, vmem],
        out_specs=vmem,
        scratch_shapes=[pltpu.VMEM((T, G4), jnp.float32)],   # x_proj
    )(sentence.astype(jnp.int32), emb_table.astype(jnp.float32),
      w_ih_p, w_hh_p, b_p, w_tag_p, b_tag_p)

    return out_padded[:, :Tg]


def lstm_tagger_reference(sentence, emb_table, w_ih, w_hh, b, w_tag, b_tag):
    """Pure-JAX reference mirroring torch.nn.LSTM semantics (B=1)."""
    embeds = emb_table[sentence].astype(jnp.float32)
    H = w_hh.shape[0]

    def step(carry, x_t):
        h, c = carry
        gates = x_t @ w_ih + h @ w_hh + b[0]
        i_g = jax.nn.sigmoid(gates[0 * H:1 * H])
        f_g = jax.nn.sigmoid(gates[1 * H:2 * H])
        g_g = jnp.tanh(gates[2 * H:3 * H])
        o_g = jax.nn.sigmoid(gates[3 * H:4 * H])
        c_new = f_g * c + i_g * g_g
        h_new = o_g * jnp.tanh(c_new)
        return (h_new, c_new), h_new

    init = (jnp.zeros((H,), jnp.float32), jnp.zeros((H,), jnp.float32))
    _, hs = jax.lax.scan(step, init, embeds)
    return hs @ w_tag + b_tag[0]


if __name__ == "__main__":
    # Small, forward-consistent shapes (H=32 -> 4H=128 = exactly one vreg).
    EMBEDDING_DIM = 16
    HIDDEN_DIM = 32
    VOCAB_SIZE = 20
    TAGSET_SIZE = 5
    SEQ_LEN = 8

    key = jax.random.PRNGKey(0)
    k_emb, k_wih, k_whh, k_bih, k_bhh, k_wt, k_bt, k_sent = jax.random.split(key, 8)

    emb_table = jax.random.normal(k_emb, (VOCAB_SIZE, EMBEDDING_DIM), jnp.float32) * 0.1
    # torch weight_ih_l0 is (4H, E); we store its transpose (E, 4H).
    w_ih = jax.random.normal(k_wih, (EMBEDDING_DIM, 4 * HIDDEN_DIM), jnp.float32) * 0.1
    w_hh = jax.random.normal(k_whh, (HIDDEN_DIM, 4 * HIDDEN_DIM), jnp.float32) * 0.1
    b_ih = jax.random.normal(k_bih, (4 * HIDDEN_DIM,), jnp.float32) * 0.1
    b_hh = jax.random.normal(k_bhh, (4 * HIDDEN_DIM,), jnp.float32) * 0.1
    b = (b_ih + b_hh).reshape(1, 4 * HIDDEN_DIM)
    # torch hidden2tag.weight is (Tg, H); we store its transpose (H, Tg).
    w_tag = jax.random.normal(k_wt, (HIDDEN_DIM, TAGSET_SIZE), jnp.float32) * 0.1
    b_tag = jax.random.normal(k_bt, (TAGSET_SIZE,), jnp.float32).reshape(1, TAGSET_SIZE) * 0.1

    sentence = jax.random.randint(k_sent, (SEQ_LEN,), 0, VOCAB_SIZE, dtype=jnp.int32)

    tag_space = lstm_tagger_forward(sentence, emb_table, w_ih, w_hh, b, w_tag, b_tag)
    tag_space = jax.block_until_ready(tag_space)

    ref = lstm_tagger_reference(sentence, emb_table, w_ih, w_hh, b, w_tag, b_tag)
    assert tag_space.shape == (SEQ_LEN, TAGSET_SIZE)
    assert jnp.allclose(tag_space, ref, atol=1e-4, rtol=1e-4), "mismatch vs reference"

    print("KERNEL_OK")
</pallas_src>

<mosaic_0001>
module attributes {stable_mosaic.version = 11 : i64} {
  func.func @lstm_tagger_kernel(%arg0: memref<8xi32, #tpu.memory_space<smem>>, %arg1: memref<20x16xf32, #tpu.memory_space<vmem>>, %arg2: memref<16x128xf32, #tpu.memory_space<vmem>>, %arg3: memref<32x128xf32, #tpu.memory_space<vmem>>, %arg4: memref<1x128xf32, #tpu.memory_space<vmem>>, %arg5: memref<32x128xf32, #tpu.memory_space<vmem>>, %arg6: memref<1x128xf32, #tpu.memory_space<vmem>>, %arg7: memref<8x128xf32, #tpu.memory_space<vmem>>, %arg8: memref<8x128xf32, #tpu.memory_space<vmem>>) attributes {dimension_semantics = [], scalar_prefetch = 0 : i64, scratch_operands = 1 : i64, tpu.core_type = #tpu.core_type<tc>} {
    %c0 = arith.constant 0 : index
    %0 = memref.load %arg0[%c0] : memref<8xi32, #tpu.memory_space<smem>>
    %1 = arith.index_cast %0 : i32 to index
    %c0_0 = arith.constant 0 : index
    %2 = vector.load %arg1[%1, %c0_0] : memref<20x16xf32, #tpu.memory_space<vmem>>, vector<1x16xf32>
    %c1 = arith.constant 1 : index
    %3 = memref.load %arg0[%c1] : memref<8xi32, #tpu.memory_space<smem>>
    %4 = arith.index_cast %3 : i32 to index
    %c0_1 = arith.constant 0 : index
    %5 = vector.load %arg1[%4, %c0_1] : memref<20x16xf32, #tpu.memory_space<vmem>>, vector<1x16xf32>
    %c2 = arith.constant 2 : index
    %6 = memref.load %arg0[%c2] : memref<8xi32, #tpu.memory_space<smem>>
    %7 = arith.index_cast %6 : i32 to index
    %c0_2 = arith.constant 0 : index
    %8 = vector.load %arg1[%7, %c0_2] : memref<20x16xf32, #tpu.memory_space<vmem>>, vector<1x16xf32>
    %c3 = arith.constant 3 : index
    %9 = memref.load %arg0[%c3] : memref<8xi32, #tpu.memory_space<smem>>
    %10 = arith.index_cast %9 : i32 to index
    %c0_3 = arith.constant 0 : index
    %11 = vector.load %arg1[%10, %c0_3] : memref<20x16xf32, #tpu.memory_space<vmem>>, vector<1x16xf32>
    %c4 = arith.constant 4 : index
    %12 = memref.load %arg0[%c4] : memref<8xi32, #tpu.memory_space<smem>>
    %13 = arith.index_cast %12 : i32 to index
    %c0_4 = arith.constant 0 : index
    %14 = vector.load %arg1[%13, %c0_4] : memref<20x16xf32, #tpu.memory_space<vmem>>, vector<1x16xf32>
    %c5 = arith.constant 5 : index
    %15 = memref.load %arg0[%c5] : memref<8xi32, #tpu.memory_space<smem>>
    %16 = arith.index_cast %15 : i32 to index
    %c0_5 = arith.constant 0 : index
    %17 = vector.load %arg1[%16, %c0_5] : memref<20x16xf32, #tpu.memory_space<vmem>>, vector<1x16xf32>
    %c6 = arith.constant 6 : index
    %18 = memref.load %arg0[%c6] : memref<8xi32, #tpu.memory_space<smem>>
    %19 = arith.index_cast %18 : i32 to index
    %c0_6 = arith.constant 0 : index
    %20 = vector.load %arg1[%19, %c0_6] : memref<20x16xf32, #tpu.memory_space<vmem>>, vector<1x16xf32>
    %c7 = arith.constant 7 : index
    %21 = memref.load %arg0[%c7] : memref<8xi32, #tpu.memory_space<smem>>
    %22 = arith.index_cast %21 : i32 to index
    %c0_7 = arith.constant 0 : index
    %23 = vector.load %arg1[%22, %c0_7] : memref<20x16xf32, #tpu.memory_space<vmem>>, vector<1x16xf32>
    %24 = tpu.concatenate %2, %5, %8, %11, %14, %17, %20, %23 in 0 : vector<1x16xf32>, vector<1x16xf32>, vector<1x16xf32>, vector<1x16xf32>, vector<1x16xf32>, vector<1x16xf32>, vector<1x16xf32>, vector<1x16xf32> -> vector<8x16xf32>
    %c0_8 = arith.constant 0 : index
    %c0_9 = arith.constant 0 : index
    %25 = vector.load %arg2[%c0_8, %c0_9] : memref<16x128xf32, #tpu.memory_space<vmem>>, vector<16x128xf32>
    %cst = arith.constant dense<0.000000e+00> : vector<8x128xf32>
    %26 = tpu.matmul %24, %25, %cst {dimension_numbers = #tpu.dot_dimension_numbers<[1], [0], [0], [1], [0, 0, 1, 1], [], []>} : vector<8x16xf32>, vector<16x128xf32>, vector<8x128xf32> -> vector<8x128xf32>
    %c0_10 = arith.constant 0 : index
    %c0_11 = arith.constant 0 : index
    %27 = vector.load %arg4[%c0_10, %c0_11] : memref<1x128xf32, #tpu.memory_space<vmem>>, vector<1x128xf32>
    %28 = vector.broadcast %27 : vector<1x128xf32> to vector<8x128xf32>
    %29 = arith.addf %26, %28 : vector<8x128xf32>
    %c0_12 = arith.constant 0 : index
    %c0_13 = arith.constant 0 : index
    %30 = vector.load %arg8[%c0_12, %c0_13] : memref<8x128xf32, #tpu.memory_space<vmem>>, vector<8x128xf32>
    tpu.vector_store %arg8[%c0_12, %c0_13], %29 {strides = array<i32>} : memref<8x128xf32, #tpu.memory_space<vmem>>, vector<8x128xf32>,
    %cst_14 = arith.constant 0.000000e+00 : f32
    %31 = vector.broadcast %cst_14 : f32 to vector<1x32xf32>
    %cst_15 = arith.constant 0.000000e+00 : f32
    %32 = vector.broadcast %cst_15 : f32 to vector<1x32xf32>
    %c0_16 = arith.constant 0 : index
    %c0_17 = arith.constant 0 : index
    %33 = vector.load %arg8[%c0_16, %c0_17] : memref<8x128xf32, #tpu.memory_space<vmem>>, vector<1x128xf32>
    %c0_18 = arith.constant 0 : index
    %c0_19 = arith.constant 0 : index
    %34 = vector.load %arg3[%c0_18, %c0_19] : memref<32x128xf32, #tpu.memory_space<vmem>>, vector<32x128xf32>
    %cst_20 = arith.constant dense<0.000000e+00> : vector<1x128xf32>
    %35 = tpu.matmul %31, %34, %cst_20 {dimension_numbers = #tpu.dot_dimension_numbers<[1], [0], [0], [1], [0, 0, 1, 1], [], []>} : vector<1x32xf32>, vector<32x128xf32>, vector<1x128xf32> -> vector<1x128xf32>
    %36 = arith.addf %33, %35 : vector<1x128xf32>
    %37 = arith.negf %36 : vector<1x128xf32>
    %38 = math.exp %37 : vector<1x128xf32>
    %cst_21 = arith.constant 1.000000e+00 : f32
    %39 = vector.broadcast %cst_21 : f32 to vector<1x128xf32>
    %40 = arith.addf %39, %38 : vector<1x128xf32>
    %41 = arith.divf %39, %40 : vector<1x128xf32>
    %42 = math.tanh %36 : vector<1x128xf32>
    %43 = vector.extract_strided_slice %41 {offsets = [0, 0], sizes = [1, 32], strides = [1, 1]} : vector<1x128xf32> to vector<1x32xf32>
    %44 = vector.extract_strided_slice %41 {offsets = [0, 32], sizes = [1, 32], strides = [1, 1]} : vector<1x128xf32> to vector<1x32xf32>
    %45 = vector.extract_strided_slice %42 {offsets = [0, 64], sizes = [1, 32], strides = [1, 1]} : vector<1x128xf32> to vector<1x32xf32>
    %46 = vector.extract_strided_slice %41 {offsets = [0, 96], sizes = [1, 32], strides = [1, 1]} : vector<1x128xf32> to vector<1x32xf32>
    %47 = arith.mulf %44, %32 : vector<1x32xf32>
    %48 = arith.mulf %43, %45 : vector<1x32xf32>
    %49 = arith.addf %47, %48 : vector<1x32xf32>
    %50 = math.tanh %49 : vector<1x32xf32>
    %51 = arith.mulf %46, %50 : vector<1x32xf32>
    %c1_22 = arith.constant 1 : index
    %c0_23 = arith.constant 0 : index
    %52 = vector.load %arg8[%c1_22, %c0_23] : memref<8x128xf32, #tpu.memory_space<vmem>>, vector<1x128xf32>
    %c0_24 = arith.constant 0 : index
    %c0_25 = arith.constant 0 : index
    %53 = vector.load %arg3[%c0_24, %c0_25] : memref<32x128xf32, #tpu.memory_space<vmem>>, vector<32x128xf32>
    %cst_26 = arith.constant dense<0.000000e+00> : vector<1x128xf32>
    %54 = tpu.matmul %51, %53, %cst_26 {dimension_numbers = #tpu.dot_dimension_numbers<[1], [0], [0], [1], [0, 0, 1, 1], [], []>} : vector<1x32xf32>, vector<32x128xf32>, vector<1x128xf32> -> vector<1x128xf32>
    %55 = arith.addf %52, %54 : vector<1x128xf32>
    %56 = arith.negf %55 : vector<1x128xf32>
    %57 = math.exp %56 : vector<1x128xf32>
    %cst_27 = arith.constant 1.000000e+00 : f32
    %58 = vector.broadcast %cst_27 : f32 to vector<1x128xf32>
    %59 = arith.addf %58, %57 : vector<1x128xf32>
    %60 = arith.divf %58, %59 : vector<1x128xf32>
    %61 = math.tanh %55 : vector<1x128xf32>
    %62 = vector.extract_strided_slice %60 {offsets = [0, 0], sizes = [1, 32], strides = [1, 1]} : vector<1x128xf32> to vector<1x32xf32>
    %63 = vector.extract_strided_slice %60 {offsets = [0, 32], sizes = [1, 32], strides = [1, 1]} : vector<1x128xf32> to vector<1x32xf32>
    %64 = vector.extract_strided_slice %61 {offsets = [0, 64], sizes = [1, 32], strides = [1, 1]} : vector<1x128xf32> to vector<1x32xf32>
    %65 = vector.extract_strided_slice %60 {offsets = [0, 96], sizes = [1, 32], strides = [1, 1]} : vector<1x128xf32> to vector<1x32xf32>
    %66 = arith.mulf %63, %49 : vector<1x32xf32>
    %67 = arith.mulf %62, %64 : vector<1x32xf32>
    %68 = arith.addf %66, %67 : vector<1x32xf32>
    %69 = math.tanh %68 : vector<1x32xf32>
    %70 = arith.mulf %65, %69 : vector<1x32xf32>
    %c2_28 = arith.constant 2 : index
    %c0_29 = arith.constant 0 : index
    %71 = vector.load %arg8[%c2_28, %c0_29] : memref<8x128xf32, #tpu.memory_space<vmem>>, vector<1x128xf32>
    %c0_30 = arith.constant 0 : index
    %c0_31 = arith.constant 0 : index
    %72 = vector.load %arg3[%c0_30, %c0_31] : memref<32x128xf32, #tpu.memory_space<vmem>>, vector<32x128xf32>
    %cst_32 = arith.constant dense<0.000000e+00> : vector<1x128xf32>
    %73 = tpu.matmul %70, %72, %cst_32 {dimension_numbers = #tpu.dot_dimension_numbers<[1], [0], [0], [1], [0, 0, 1, 1], [], []>} : vector<1x32xf32>, vector<32x128xf32>, vector<1x128xf32> -> vector<1x128xf32>
    %74 = arith.addf %71, %73 : vector<1x128xf32>
    %75 = arith.negf %74 : vector<1x128xf32>
    %76 = math.exp %75 : vector<1x128xf32>
    %cst_33 = arith.constant 1.000000e+00 : f32
    %77 = vector.broadcast %cst_33 : f32 to vector<1x128xf32>
    %78 = arith.addf %77, %76 : vector<1x128xf32>
    %79 = arith.divf %77, %78 : vector<1x128xf32>
    %80 = math.tanh %74 : vector<1x128xf32>
    %81 = vector.extract_strided_slice %79 {offsets = [0, 0], sizes = [1, 32], strides = [1, 1]} : vector<1x128xf32> to vector<1x32xf32>
    %82 = vector.extract_strided_slice %79 {offsets = [0, 32], sizes = [1, 32], strides = [1, 1]} : vector<1x128xf32> to vector<1x32xf32>
    %83 = vector.extract_strided_slice %80 {offsets = [0, 64], sizes = [1, 32], strides = [1, 1]} : vector<1x128xf32> to vector<1x32xf32>
    %84 = vector.extract_strided_slice %79 {offsets = [0, 96], sizes = [1, 32], strides = [1, 1]} : vector<1x128xf32> to vector<1x32xf32>
    %85 = arith.mulf %82, %68 : vector<1x32xf32>
    %86 = arith.mulf %81, %83 : vector<1x32xf32>
    %87 = arith.addf %85, %86 : vector<1x32xf32>
    %88 = math.tanh %87 : vector<1x32xf32>
    %89 = arith.mulf %84, %88 : vector<1x32xf32>
    %c3_34 = arith.constant 3 : index
    %c0_35 = arith.constant 0 : index
    %90 = vector.load %arg8[%c3_34, %c0_35] : memref<8x128xf32, #tpu.memory_space<vmem>>, vector<1x128xf32>
    %c0_36 = arith.constant 0 : index
    %c0_37 = arith.constant 0 : index
    %91 = vector.load %arg3[%c0_36, %c0_37] : memref<32x128xf32, #tpu.memory_space<vmem>>, vector<32x128xf32>
    %cst_38 = arith.constant dense<0.000000e+00> : vector<1x128xf32>
    %92 = tpu.matmul %89, %91, %cst_38 {dimension_numbers = #tpu.dot_dimension_numbers<[1], [0], [0], [1], [0, 0, 1, 1], [], []>} : vector<1x32xf32>, vector<32x128xf32>, vector<1x128xf32> -> vector<1x128xf32>
    %93 = arith.addf %90, %92 : vector<1x128xf32>
    %94 = arith.negf %93 : vector<1x128xf32>
    %95 = math.exp %94 : vector<1x128xf32>
    %cst_39 = arith.constant 1.000000e+00 : f32
    %96 = vector.broadcast %cst_39 : f32 to vector<1x128xf32>
    %97 = arith.addf %96, %95 : vector<1x128xf32>
    %98 = arith.divf %96, %97 : vector<1x128xf32>
    %99 = math.tanh %93 : vector<1x128xf32>
    %100 = vector.extract_strided_slice %98 {offsets = [0, 0], sizes = [1, 32], strides = [1, 1]} : vector<1x128xf32> to vector<1x32xf32>
    %101 = vector.extract_strided_slice %98 {offsets = [0, 32], sizes = [1, 32], strides = [1, 1]} : vector<1x128xf32> to vector<1x32xf32>
    %102 = vector.extract_strided_slice %99 {offsets = [0, 64], sizes = [1, 32], strides = [1, 1]} : vector<1x128xf32> to vector<1x32xf32>
    %103 = vector.extract_strided_slice %98 {offsets = [0, 96], sizes = [1, 32], strides = [1, 1]} : vector<1x128xf32> to vector<1x32xf32>
    %104 = arith.mulf %101, %87 : vector<1x32xf32>
    %105 = arith.mulf %100, %102 : vector<1x32xf32>
    %106 = arith.addf %104, %105 : vector<1x32xf32>
    %107 = math.tanh %106 : vector<1x32xf32>
    %108 = arith.mulf %103, %107 : vector<1x32xf32>
    %c4_40 = arith.constant 4 : index
    %c0_41 = arith.constant 0 : index
    %109 = vector.load %arg8[%c4_40, %c0_41] : memref<8x128xf32, #tpu.memory_space<vmem>>, vector<1x128xf32>
    %c0_42 = arith.constant 0 : index
    %c0_43 = arith.constant 0 : index
    %110 = vector.load %arg3[%c0_42, %c0_43] : memref<32x128xf32, #tpu.memory_space<vmem>>, vector<32x128xf32>
    %cst_44 = arith.constant dense<0.000000e+00> : vector<1x128xf32>
    %111 = tpu.matmul %108, %110, %cst_44 {dimension_numbers = #tpu.dot_dimension_numbers<[1], [0], [0], [1], [0, 0, 1, 1], [], []>} : vector<1x32xf32>, vector<32x128xf32>, vector<1x128xf32> -> vector<1x128xf32>
    %112 = arith.addf %109, %111 : vector<1x128xf32>
    %113 = arith.negf %112 : vector<1x128xf32>
    %114 = math.exp %113 : vector<1x128xf32>
    %cst_45 = arith.constant 1.000000e+00 : f32
    %115 = vector.broadcast %cst_45 : f32 to vector<1x128xf32>
    %116 = arith.addf %115, %114 : vector<1x128xf32>
    %117 = arith.divf %115, %116 : vector<1x128xf32>
    %118 = math.tanh %112 : vector<1x128xf32>
    %119 = vector.extract_strided_slice %117 {offsets = [0, 0], sizes = [1, 32], strides = [1, 1]} : vector<1x128xf32> to vector<1x32xf32>
    %120 = vector.extract_strided_slice %117 {offsets = [0, 32], sizes = [1, 32], strides = [1, 1]} : vector<1x128xf32> to vector<1x32xf32>
    %121 = vector.extract_strided_slice %118 {offsets = [0, 64], sizes = [1, 32], strides = [1, 1]} : vector<1x128xf32> to vector<1x32xf32>
    %122 = vector.extract_strided_slice %117 {offsets = [0, 96], sizes = [1, 32], strides = [1, 1]} : vector<1x128xf32> to vector<1x32xf32>
    %123 = arith.mulf %120, %106 : vector<1x32xf32>
    %124 = arith.mulf %119, %121 : vector<1x32xf32>
    %125 = arith.addf %123, %124 : vector<1x32xf32>
    %126 = math.tanh %125 : vector<1x32xf32>
    %127 = arith.mulf %122, %126 : vector<1x32xf32>
    %c5_46 = arith.constant 5 : index
    %c0_47 = arith.constant 0 : index
    %128 = vector.load %arg8[%c5_46, %c0_47] : memref<8x128xf32, #tpu.memory_space<vmem>>, vector<1x128xf32>
    %c0_48 = arith.constant 0 : index
    %c0_49 = arith.constant 0 : index
    %129 = vector.load %arg3[%c0_48, %c0_49] : memref<32x128xf32, #tpu.memory_space<vmem>>, vector<32x128xf32>
    %cst_50 = arith.constant dense<0.000000e+00> : vector<1x128xf32>
    %130 = tpu.matmul %127, %129, %cst_50 {dimension_numbers = #tpu.dot_dimension_numbers<[1], [0], [0], [1], [0, 0, 1, 1], [], []>} : vector<1x32xf32>, vector<32x128xf32>, vector<1x128xf32> -> vector<1x128xf32>
    %131 = arith.addf %128, %130 : vector<1x128xf32>
    %132 = arith.negf %131 : vector<1x128xf32>
    %133 = math.exp %132 : vector<1x128xf32>
    %cst_51 = arith.constant 1.000000e+00 : f32
    %134 = vector.broadcast %cst_51 : f32 to vector<1x128xf32>
    %135 = arith.addf %134, %133 : vector<1x128xf32>
    %136 = arith.divf %134, %135 : vector<1x128xf32>
    %137 = math.tanh %131 : vector<1x128xf32>
    %138 = vector.extract_strided_slice %136 {offsets = [0, 0], sizes = [1, 32], strides = [1, 1]} : vector<1x128xf32> to vector<1x32xf32>
    %139 = vector.extract_strided_slice %136 {offsets = [0, 32], sizes = [1, 32], strides = [1, 1]} : vector<1x128xf32> to vector<1x32xf32>
    %140 = vector.extract_strided_slice %137 {offsets = [0, 64], sizes = [1, 32], strides = [1, 1]} : vector<1x128xf32> to vector<1x32xf32>
    %141 = vector.extract_strided_slice %136 {offsets = [0, 96], sizes = [1, 32], strides = [1, 1]} : vector<1x128xf32> to vector<1x32xf32>
    %142 = arith.mulf %139, %125 : vector<1x32xf32>
    %143 = arith.mulf %138, %140 : vector<1x32xf32>
    %144 = arith.addf %142, %143 : vector<1x32xf32>
    %145 = math.tanh %144 : vector<1x32xf32>
    %146 = arith.mulf %141, %145 : vector<1x32xf32>
    %c6_52 = arith.constant 6 : index
    %c0_53 = arith.constant 0 : index
    %147 = vector.load %arg8[%c6_52, %c0_53] : memref<8x128xf32, #tpu.memory_space<vmem>>, vector<1x128xf32>
    %c0_54 = arith.constant 0 : index
    %c0_55 = arith.constant 0 : index
    %148 = vector.load %arg3[%c0_54, %c0_55] : memref<32x128xf32, #tpu.memory_space<vmem>>, vector<32x128xf32>
    %cst_56 = arith.constant dense<0.000000e+00> : vector<1x128xf32>
    %149 = tpu.matmul %146, %148, %cst_56 {dimension_numbers = #tpu.dot_dimension_numbers<[1], [0], [0], [1], [0, 0, 1, 1], [], []>} : vector<1x32xf32>, vector<32x128xf32>, vector<1x128xf32> -> vector<1x128xf32>
    %150 = arith.addf %147, %149 : vector<1x128xf32>
    %151 = arith.negf %150 : vector<1x128xf32>
    %152 = math.exp %151 : vector<1x128xf32>
    %cst_57 = arith.constant 1.000000e+00 : f32
    %153 = vector.broadcast %cst_57 : f32 to vector<1x128xf32>
    %154 = arith.addf %153, %152 : vector<1x128xf32>
    %155 = arith.divf %153, %154 : vector<1x128xf32>
    %156 = math.tanh %150 : vector<1x128xf32>
    %157 = vector.extract_strided_slice %155 {offsets = [0, 0], sizes = [1, 32], strides = [1, 1]} : vector<1x128xf32> to vector<1x32xf32>
    %158 = vector.extract_strided_slice %155 {offsets = [0, 32], sizes = [1, 32], strides = [1, 1]} : vector<1x128xf32> to vector<1x32xf32>
    %159 = vector.extract_strided_slice %156 {offsets = [0, 64], sizes = [1, 32], strides = [1, 1]} : vector<1x128xf32> to vector<1x32xf32>
    %160 = vector.extract_strided_slice %155 {offsets = [0, 96], sizes = [1, 32], strides = [1, 1]} : vector<1x128xf32> to vector<1x32xf32>
    %161 = arith.mulf %158, %144 : vector<1x32xf32>
    %162 = arith.mulf %157, %159 : vector<1x32xf32>
    %163 = arith.addf %161, %162 : vector<1x32xf32>
    %164 = math.tanh %163 : vector<1x32xf32>
    %165 = arith.mulf %160, %164 : vector<1x32xf32>
    %c7_58 = arith.constant 7 : index
    %c0_59 = arith.constant 0 : index
    %166 = vector.load %arg8[%c7_58, %c0_59] : memref<8x128xf32, #tpu.memory_space<vmem>>, vector<1x128xf32>
    %c0_60 = arith.constant 0 : index
    %c0_61 = arith.constant 0 : index
    %167 = vector.load %arg3[%c0_60, %c0_61] : memref<32x128xf32, #tpu.memory_space<vmem>>, vector<32x128xf32>
    %cst_62 = arith.constant dense<0.000000e+00> : vector<1x128xf32>
    %168 = tpu.matmul %165, %167, %cst_62 {dimension_numbers = #tpu.dot_dimension_numbers<[1], [0], [0], [1], [0, 0, 1, 1], [], []>} : vector<1x32xf32>, vector<32x128xf32>, vector<1x128xf32> -> vector<1x128xf32>
    %169 = arith.addf %166, %168 : vector<1x128xf32>
    %170 = arith.negf %169 : vector<1x128xf32>
    %171 = math.exp %170 : vector<1x128xf32>
    %cst_63 = arith.constant 1.000000e+00 : f32
    %172 = vector.broadcast %cst_63 : f32 to vector<1x128xf32>
    %173 = arith.addf %172, %171 : vector<1x128xf32>
    %174 = arith.divf %172, %173 : vector<1x128xf32>
    %175 = math.tanh %169 : vector<1x128xf32>
    %176 = vector.extract_strided_slice %174 {offsets = [0, 0], sizes = [1, 32], strides = [1, 1]} : vector<1x128xf32> to vector<1x32xf32>
    %177 = vector.extract_strided_slice %174 {offsets = [0, 32], sizes = [1, 32], strides = [1, 1]} : vector<1x128xf32> to vector<1x32xf32>
    %178 = vector.extract_strided_slice %175 {offsets = [0, 64], sizes = [1, 32], strides = [1, 1]} : vector<1x128xf32> to vector<1x32xf32>
    %179 = vector.extract_strided_slice %174 {offsets = [0, 96], sizes = [1, 32], strides = [1, 1]} : vector<1x128xf32> to vector<1x32xf32>
    %180 = arith.mulf %177, %163 : vector<1x32xf32>
    %181 = arith.mulf %176, %178 : vector<1x32xf32>
    %182 = arith.addf %180, %181 : vector<1x32xf32>
    %183 = math.tanh %182 : vector<1x32xf32>
    %184 = arith.mulf %179, %183 : vector<1x32xf32>
    %185 = tpu.concatenate %51, %70, %89, %108, %127, %146, %165, %184 in 0 : vector<1x32xf32>, vector<1x32xf32>, vector<1x32xf32>, vector<1x32xf32>, vector<1x32xf32>, vector<1x32xf32>, vector<1x32xf32>, vector<1x32xf32> -> vector<8x32xf32>
    %c0_64 = arith.constant 0 : index
    %c0_65 = arith.constant 0 : index
    %186 = vector.load %arg5[%c0_64, %c0_65] : memref<32x128xf32, #tpu.memory_space<vmem>>, vector<32x128xf32>
    %cst_66 = arith.constant dense<0.000000e+00> : vector<8x128xf32>
    %187 = tpu.matmul %185, %186, %cst_66 {dimension_numbers = #tpu.dot_dimension_numbers<[1], [0], [0], [1], [0, 0, 1, 1], [], []>} : vector<8x32xf32>, vector<32x128xf32>, vector<8x128xf32> -> vector<8x128xf32>
    %c0_67 = arith.constant 0 : index
    %c0_68 = arith.constant 0 : index
    %188 = vector.load %arg6[%c0_67, %c0_68] : memref<1x128xf32, #tpu.memory_space<vmem>>, vector<1x128xf32>
    %189 = vector.broadcast %188 : vector<1x128xf32> to vector<8x128xf32>
    %190 = arith.addf %187, %189 : vector<8x128xf32>
    %c0_69 = arith.constant 0 : index
    %c0_70 = arith.constant 0 : index
    %191 = vector.load %arg7[%c0_69, %c0_70] : memref<8x128xf32, #tpu.memory_space<vmem>>, vector<8x128xf32>
    tpu.vector_store %arg7[%c0_69, %c0_70], %190 {strides = array<i32>} : memref<8x128xf32, #tpu.memory_space<vmem>>, vector<8x128xf32>,
    return
  }
}

</mosaic_0001>

<llo_original>
// kernel: tpu_custom_call.1
$region0: #{tpu_custom_call.1}
  #allocation0 [shape = 'u32[]', space=smem, size = 0x4, offset = 0x4, fixed_abs, tag = 'smem constant byte address 0x4 - core index']
  #allocation1 [shape = 'u32[144,128]{1,0:T(1,128)}', space=vmem, size = 0x12000, scoped, tag = 'internal scratch']
  #allocation2 [shape = 'f32[8,128]{1,0:T(8,128)}', space=vmem, size = 0x1000, scoped, tag = 'scratch operand']
  %s0 = inlined_call_operand.vmem [shape: s32[8], index: 0, kind: input, shape index: {}]
  %s1 = inlined_call_operand.vmem [shape: f32[20,16], index: 1, kind: input, shape index: {}]
  %s2 = inlined_call_operand.vmem [shape: f32[16,128], index: 2, kind: input, shape index: {}]
  %s3 = inlined_call_operand.vmem [shape: f32[32,128], index: 3, kind: input, shape index: {}]
  %s4 = inlined_call_operand.vmem [shape: f32[1,128], index: 4, kind: input, shape index: {}]
  %s5 = inlined_call_operand.hbm [shape: f32[32,128], index: 5, kind: input, shape index: {}]
  %s6 = inlined_call_operand.vmem [shape: f32[1,128], index: 6, kind: input, shape index: {}]
  %s7 = inlined_call_operand.hbm [shape: f32[8,128], index: 7, kind: output, shape index: {}]
  %s8 = sld [smem:[#allocation0]]
  $region46: #{tpu_custom_call.1} parent=0
    _
  %s10 = ssub.s32 1, %s8
  %s11 = scalar_select 0, %s10, %s8
  $region1: #{tpu_custom_call.1} parent=0
    #allocation3 [shape = 'u8[512]{0}', space=smem, size = 0x200, scoped, tag = 'input window, operand 0, single buffered']
    #allocation4 [shape = 's32[1]{0}', space=sflag, size = 0x4, scoped, tag = 'scoped memory for tpu_custom_call.1']
    #allocation5 [shape = 's32[1]{0}', space=sflag, size = 0x4, scoped, tag = 'scoped memory for tpu_custom_call.1']
    #allocation6 [shape = 's32[1]{0}', space=sflag, size = 0x4, scoped, tag = 'scoped memory for tpu_custom_call.1']
    #allocation7 [shape = 'u8[16384]{0}', space=vmem, size = 0x4000, scoped, tag = 'input window, operand 5, single buffered']
    #allocation8 [shape = 'u8[4096]{0}', space=vmem, size = 0x1000, scoped, tag = 'output window, operand 0, single buffered']
    %12 = vsyncpa [#allocation6], 0
    %13 = vsyncpa [#allocation4], 0
    %14 = vsyncpa [#allocation5], 0
    // Predicated region
    $region2: #{tpu_custom_call.1} parent=1 // pred_check
      _
    $region3: #{tpu_custom_call.1} parent=1 // pred_check_branch
      %16 = sbr.rel (0) target = $region5
    $region4: #{tpu_custom_call.1} parent=1 // pred_region
      %s18 = ssub.s32 16, 16
      %19 = vsyncadd [#allocation6], %s18
      %s21 = sshll.u32 %s0, 4
      %s22 = int_to_ptr.vmem [resolvable:$true] %s21
      %24 = dma.vmem_to_smem %s22, 16, [#allocation3], [#allocation6]
    $region5: #{tpu_custom_call.1} parent=1 // pred_fallthru
      _
    // Predicated region
    $region6: #{tpu_custom_call.1} parent=1 // pred_check
      _
    $region7: #{tpu_custom_call.1} parent=1 // pred_check_branch
      %26 = sbr.rel (0) target = $region9
    $region8: #{tpu_custom_call.1} parent=1 // pred_region
      _
    $region9: #{tpu_custom_call.1} parent=1 // pred_fallthru
      _
    // Predicated region
    $region10: #{tpu_custom_call.1} parent=1 // pred_check
      _
    $region11: #{tpu_custom_call.1} parent=1 // pred_check_branch
      %28 = sbr.rel (0) target = $region13
    $region12: #{tpu_custom_call.1} parent=1 // pred_region
      _
    $region13: #{tpu_custom_call.1} parent=1 // pred_fallthru
      _
    // Predicated region
    $region14: #{tpu_custom_call.1} parent=1 // pred_check
      _
    $region15: #{tpu_custom_call.1} parent=1 // pred_check_branch
      %30 = sbr.rel (0) target = $region17
    $region16: #{tpu_custom_call.1} parent=1 // pred_region
      _
    $region17: #{tpu_custom_call.1} parent=1 // pred_fallthru
      _
    // Predicated region
    $region18: #{tpu_custom_call.1} parent=1 // pred_check
      _
    $region19: #{tpu_custom_call.1} parent=1 // pred_check_branch
      %32 = sbr.rel (0) target = $region21
    $region20: #{tpu_custom_call.1} parent=1 // pred_region
      _
    $region21: #{tpu_custom_call.1} parent=1 // pred_fallthru
      _
    // Predicated region
    $region22: #{tpu_custom_call.1} parent=1 // pred_check
      _
    $region23: #{tpu_custom_call.1} parent=1 // pred_check_branch
      %34 = sbr.rel (0) target = $region25
    $region24: #{tpu_custom_call.1} parent=1 // pred_region
      %s36 = ssub.s32 512, 512
      %37 = vsyncadd [#allocation4], %s36
      %s38 = sshll.u32 [#allocation7], 4
      %s39 = int_to_ptr.vmem [resolvable:$true] %s38
      %44 = dma.hbm_to_vmem [thread:$0]  %s5, 512, %s39, [#allocation4], 128, 128, 8
    $region25: #{tpu_custom_call.1} parent=1 // pred_fallthru
      _
    // Predicated region
    $region26: #{tpu_custom_call.1} parent=1 // pred_check
      _
    $region27: #{tpu_custom_call.1} parent=1 // pred_check_branch
      %46 = sbr.rel (0) target = $region29
    $region28: #{tpu_custom_call.1} parent=1 // pred_region
      _
    $region29: #{tpu_custom_call.1} parent=1 // pred_fallthru
      _
    // Predicated region
    $region30: #{tpu_custom_call.1} parent=1 // pred_check
      _
    $region31: #{tpu_custom_call.1} parent=1 // pred_check_branch
      %48 = sbr.rel (0) target = $region33
    $region32: #{tpu_custom_call.1} parent=1 // pred_region
      %49 = dma.done [#allocation6], 16
    $region33: #{tpu_custom_call.1} parent=1 // pred_fallthru
      _
    // Predicated region
    $region34: #{tpu_custom_call.1} parent=1 // pred_check
      _
    $region35: #{tpu_custom_call.1} parent=1 // pred_check_branch
      %51 = sbr.rel (0) target = $region37
    $region36: #{tpu_custom_call.1} parent=1 // pred_region
      %52 = dma.done [#allocation4], 512
    $region37: #{tpu_custom_call.1} parent=1 // pred_fallthru
      _
    %53 = sfence
    %s54 = sld [smem:[#allocation3]]
    %s55 = scalar_lea.vmem %s1, %s54
    %v56 = vld [vmem:[%s55] sm:$0x1]
    %s57 = sld [smem:[#allocation3 + $0x1]]
    %s58 = scalar_lea.vmem %s1, %s57
    %v59 = vld [vmem:[%s58] sm:$0x1]
    %s60 = sld [smem:[#allocation3 + $0x2]]
    %s61 = scalar_lea.vmem %s1, %s60
    %v62 = vld [vmem:[%s61] sm:$0x1]
    %s63 = sld [smem:[#allocation3 + $0x3]]
    %s64 = scalar_lea.vmem %s1, %s63
    %v65 = vld [vmem:[%s64] sm:$0x1]
    %s66 = sld [smem:[#allocation3 + $0x4]]
    %s67 = scalar_lea.vmem %s1, %s66
    %v68 = vld [vmem:[%s67] sm:$0x1]
    %s69 = sld [smem:[#allocation3 + $0x5]]
    %s70 = scalar_lea.vmem %s1, %s69
    %v71 = vld [vmem:[%s70] sm:$0x1]
    %s72 = sld [smem:[#allocation3 + $0x6]]
    %s73 = scalar_lea.vmem %s1, %s72
    %v74 = vld [vmem:[%s73] sm:$0x1]
    %s75 = sld [smem:[#allocation3 + $0x7]]
    %s76 = scalar_lea.vmem %s1, %s75
    %v77 = vld [vmem:[%s76] sm:$0x1]
    %v79 = vrot.slane %v59, 7
    %v82 = vrot.slane %v62, 6
    %v85 = vrot.slane %v65, 5
    %v88 = vrot.slane %v68, 4
    %v91 = vrot.slane %v71, 3
    %v94 = vrot.slane %v74, 2
    %v97 = vrot.slane %v77, 1
    %vm99 = vcmask 1040384
    %v100 = vsel %vm99, %v56, %v79
    %vm101 = vcmask 1041408
    %v102 = vsel %vm101, %v100, %v82
    %vm103 = vcmask 1042432
    %v104 = vsel %vm103, %v102, %v85
    %vm105 = vcmask 1043456
    %v106 = vsel %vm105, %v104, %v88
    %vm107 = vcmask 1044480
    %v108 = vsel %vm107, %v106, %v91
    %vm109 = vcmask 1045504
    %v110 = vsel %vm109, %v108, %v94
    %vm111 = vcmask 1046528
    %v112 = vsel %vm111, %v110, %v97
    %v113 = vld [vmem:[%s2] sm:$0xff]
    %v114 = vld [vmem:[%s2 + $0x8] sm:$0xff]
    %v115 = vld [vmem:[%s4] sm:$0x1]
    %v117 = vlaneseq
    %v118 = vshrl.u32 %v117, 7
    %v119 = vsub.s32 0, %v118
    %v120 = vrot.slane %v115, %v119
    %vm122 = vcmask 130048
    %v124 = vsel %vm122, %v112, 0
    %126 = vmatprep.subr.mxu0 0.0
    %127 = vmatpush1.msra.mxu0 %v113
    %128 = vmatprep.subr.mxu0 0.0
    %129 = vmatpush1.msra.mxu0 %v114
    %130 = vmatprep.subr.mxu0 0.0
    %131 = vmatpush1.msra.mxu0 0.0
    %132 = vmatprep.subr.mxu0 0.0
    %133 = vmatpush1.msra.mxu0 0.0
    %134 = vmatprep.subr.mxu0 0.0
    %135 = vmatpush1.msra.mxu0 0.0
    %136 = vmatprep.subr.mxu0 0.0
    %137 = vmatpush1.msra.mxu0 0.0
    %138 = vmatprep.subr.mxu0 0.0
    %139 = vmatpush1.msra.mxu0 0.0
    %140 = vmatprep.subr.mxu0 0.0
    %141 = vmatpush1.msra.mxu0 0.0
    %142 = vmatprep.subr.mxu0 0.0
    %143 = vmatpush1.msra.mxu0 0.0
    %144 = vmatprep.subr.mxu0 0.0
    %145 = vmatpush1.msra.mxu0 0.0
    %146 = vmatprep.subr.mxu0 0.0
    %147 = vmatpush1.msra.mxu0 0.0
    %148 = vmatprep.subr.mxu0 0.0
    %149 = vmatpush1.msra.mxu0 0.0
    %150 = vmatprep.subr.mxu0 0.0
    %151 = vmatpush1.msra.mxu0 0.0
    %152 = vmatprep.subr.mxu0 0.0
    %153 = vmatpush1.msra.mxu0 0.0
    %154 = vmatprep.subr.mxu0 0.0
    %155 = vmatpush1.msra.mxu0 0.0
    %156 = vmatprep.subr.mxu0 0.0
    %157 = vmatpush1.msra.mxu0 0.0
    %158 = vmatprep.subr.mxu0 0.0
    %159 = vmatpush1.msra.mxu0 0.0
    %160 = vmatprep.subr.mxu0 0.0
    %161 = vmatpush1.msra.mxu0 0.0
    %162 = vmatprep.subr.mxu0 0.0
    %163 = vmatpush1.msra.mxu0 0.0
    %164 = vmatprep.subr.mxu0 0.0
    %165 = vmatpush1.msra.mxu0 0.0
    %166 = vmatprep.subr.mxu0 0.0
    %167 = vmatpush1.msra.mxu0 0.0
    %168 = vmatprep.subr.mxu0 0.0
    %169 = vmatpush1.msra.mxu0 0.0
    %170 = vmatprep.subr.mxu0 0.0
    %171 = vmatpush1.msra.mxu0 0.0
    %172 = vmatprep.subr.mxu0 0.0
    %173 = vmatpush1.msra.mxu0 0.0
    %174 = vmatprep.subr.mxu0 0.0
    %175 = vmatpush1.msra.mxu0 0.0
    %176 = vmatprep.subr.mxu0 0.0
    %177 = vmatpush1.msra.mxu0 0.0
    %178 = vmatprep.subr.mxu0 0.0
    %179 = vmatpush1.msra.mxu0 0.0
    %180 = vmatprep.subr.mxu0 0.0
    %181 = vmatpush1.msra.mxu0 0.0
    %182 = vmatprep.subr.mxu0 0.0
    %183 = vmatpush1.msra.mxu0 0.0
    %184 = vmatprep.subr.mxu0 0.0
    %185 = vmatpush1.msra.mxu0 0.0
    %186 = vmatprep.subr.mxu0 0.0
    %187 = vmatpush1.msra.mxu0 0.0
    %188 = vmatprep.subr.mxu0 0.0
    %189 = vmatpush1.msra.mxu0 0.0
    %190 = vmatprep.mubr.f32.mxu0 0.0
    %191 = vmatmul.mubr.f32.gmra.mrb[0].mxu0 %v124
    %v192 = vpop.f32.mrb[0].mxu0
    %v193 = vadd.f32 %v120, %v192
    %v194 = vpop.f32.mrb[0].mxu0
    %195 = vdwg.mxu0
    %196 = vst [vmem:[#allocation2] sm:$0xff] %v193
    %v197 = vld [vmem:[#allocation2] sm:$0x1]
    %v198 = vld [vmem:[%s3] sm:$0xff]
    %v199 = vld [vmem:[%s3 + $0x8] sm:$0xff]
    %v200 = vld [vmem:[%s3 + $0x10] sm:$0xff]
    %v201 = vld [vmem:[%s3 + $0x18] sm:$0xff]
    %vm202 = vcmask 261120
    %v204 = vsel %vm202, 0.0, 0
    %206 = vmatprep.subr.mxu0 0.0
    %207 = vmatpush1.msra.mxu0 %v198
    %208 = vmatprep.subr.mxu0 0.0
    %209 = vmatpush1.msra.mxu0 %v199
    %210 = vmatprep.subr.mxu0 0.0
    %211 = vmatpush1.msra.mxu0 %v200
    %212 = vmatprep.subr.mxu0 0.0
    %213 = vmatpush1.msra.mxu0 %v201
    %214 = vmatprep.subr.mxu0 0.0
    %215 = vmatpush1.msra.mxu0 0.0
    %216 = vmatprep.subr.mxu0 0.0
    %217 = vmatpush1.msra.mxu0 0.0
    %218 = vmatprep.subr.mxu0 0.0
    %219 = vmatpush1.msra.mxu0 0.0
    %220 = vmatprep.subr.mxu0 0.0
    %221 = vmatpush1.msra.mxu0 0.0
    %222 = vmatprep.subr.mxu0 0.0
    %223 = vmatpush1.msra.mxu0 0.0
    %224 = vmatprep.subr.mxu0 0.0
    %225 = vmatpush1.msra.mxu0 0.0
    %226 = vmatprep.subr.mxu0 0.0
    %227 = vmatpush1.msra.mxu0 0.0
    %228 = vmatprep.subr.mxu0 0.0
    %229 = vmatpush1.msra.mxu0 0.0
    %230 = vmatprep.subr.mxu0 0.0
    %231 = vmatpush1.msra.mxu0 0.0
    %232 = vmatprep.subr.mxu0 0.0
    %233 = vmatpush1.msra.mxu0 0.0
    %234 = vmatprep.subr.mxu0 0.0
    %235 = vmatpush1.msra.mxu0 0.0
    %236 = vmatprep.subr.mxu0 0.0
    %237 = vmatpush1.msra.mxu0 0.0
    %238 = vmatprep.subr.mxu0 0.0
    %239 = vmatpush1.msra.mxu0 0.0
    %240 = vmatprep.subr.mxu0 0.0
    %241 = vmatpush1.msra.mxu0 0.0
    %242 = vmatprep.subr.mxu0 0.0
    %243 = vmatpush1.msra.mxu0 0.0
    %244 = vmatprep.subr.mxu0 0.0
    %245 = vmatpush1.msra.mxu0 0.0
    %246 = vmatprep.subr.mxu0 0.0
    %247 = vmatpush1.msra.mxu0 0.0
    %248 = vmatprep.subr.mxu0 0.0
    %249 = vmatpush1.msra.mxu0 0.0
    %250 = vmatprep.subr.mxu0 0.0
    %251 = vmatpush1.msra.mxu0 0.0
    %252 = vmatprep.subr.mxu0 0.0
    %253 = vmatpush1.msra.mxu0 0.0
    %254 = vmatprep.subr.mxu0 0.0
    %255 = vmatpush1.msra.mxu0 0.0
    %256 = vmatprep.subr.mxu0 0.0
    %257 = vmatpush1.msra.mxu0 0.0
    %258 = vmatprep.subr.mxu0 0.0
    %259 = vmatpush1.msra.mxu0 0.0
    %260 = vmatprep.subr.mxu0 0.0
    %261 = vmatpush1.msra.mxu0 0.0
    %262 = vmatprep.subr.mxu0 0.0
    %263 = vmatpush1.msra.mxu0 0.0
    %264 = vmatprep.subr.mxu0 0.0
    %265 = vmatpush1.msra.mxu0 0.0
    %266 = vmatprep.subr.mxu0 0.0
    %267 = vmatpush1.msra.mxu0 0.0
    %268 = vmatprep.subr.mxu0 0.0
    %269 = vmatpush1.msra.mxu0 0.0
    %270 = vmatprep.mubr.f32.mxu0 0.0
    %271 = vmatmul.mubr.f32.gmra.mrb[0].mxu0 %v204
    %v272 = vpop.f32.mrb[0].mxu0
    %v273 = vadd.f32 0.0, %v272
    %v274 = vpop.f32.mrb[0].mxu0
    %275 = vdwg.mxu0
    %v276 = vadd.f32 %v197, %v273
    %v277 = vxor.u32 %v276, 2147483648
    %v278 = vmul.f32 %v277, 1.442695
    %v279 = vpow.pop %v278
    %v280 = vadd.f32 %v279, 1.0
    %v281 = vrcp.pop %v280
    %v282 = vmul.f32 1.0, %v281
    %v283 = vtanh.pop %v276
    %v284 = vmul.f32 %v282, 0.0
    %286 = vrot.lane.b32.xlu0 %v283, 64
    %v287 = vpop.permute.xlu0 %286
    %v289 = vmul.f32 %v282, %v287
    %291 = vrot.lane.b32.xlu0 %v289, 32
    %v292 = vpop.permute.xlu0 %291
    %v294 = vadd.f32 %v284, %v292
    %v295 = vtanh.pop %v294
    %297 = vrot.lane.b32.xlu0 %v295, 64
    %v298 = vpop.permute.xlu0 %297
    %v300 = vmul.f32 %v282, %v298
    %v301 = vld [vmem:[#allocation2 + $0x1] sm:$0x1]
    %303 = vrot.lane.b32.xlu0 %v300, 32
    %v304 = vpop.permute.xlu0 %303
    %v305 = vsel %vm202, %v304, 0
    %307 = vmatprep.subr.mxu0 0.0
    %308 = vmatpush1.msra.mxu0 %v198
    %309 = vmatprep.subr.mxu0 0.0
    %310 = vmatpush1.msra.mxu0 %v199
    %311 = vmatprep.subr.mxu0 0.0
    %312 = vmatpush1.msra.mxu0 %v200
    %313 = vmatprep.subr.mxu0 0.0
    %314 = vmatpush1.msra.mxu0 %v201
    %315 = vmatprep.subr.mxu0 0.0
    %316 = vmatpush1.msra.mxu0 0.0
    %317 = vmatprep.subr.mxu0 0.0
    %318 = vmatpush1.msra.mxu0 0.0
    %319 = vmatprep.subr.mxu0 0.0
    %320 = vmatpush1.msra.mxu0 0.0
    %321 = vmatprep.subr.mxu0 0.0
    %322 = vmatpush1.msra.mxu0 0.0
    %323 = vmatprep.subr.mxu0 0.0
    %324 = vmatpush1.msra.mxu0 0.0
    %325 = vmatprep.subr.mxu0 0.0
    %326 = vmatpush1.msra.mxu0 0.0
    %327 = vmatprep.subr.mxu0 0.0
    %328 = vmatpush1.msra.mxu0 0.0
    %329 = vmatprep.subr.mxu0 0.0
    %330 = vmatpush1.msra.mxu0 0.0
    %331 = vmatprep.subr.mxu0 0.0
    %332 = vmatpush1.msra.mxu0 0.0
    %333 = vmatprep.subr.mxu0 0.0
    %334 = vmatpush1.msra.mxu0 0.0
    %335 = vmatprep.subr.mxu0 0.0
    %336 = vmatpush1.msra.mxu0 0.0
    %337 = vmatprep.subr.mxu0 0.0
    %338 = vmatpush1.msra.mxu0 0.0
    %339 = vmatprep.subr.mxu0 0.0
    %340 = vmatpush1.msra.mxu0 0.0
    %341 = vmatprep.subr.mxu0 0.0
    %342 = vmatpush1.msra.mxu0 0.0
    %343 = vmatprep.subr.mxu0 0.0
    %344 = vmatpush1.msra.mxu0 0.0
    %345 = vmatprep.subr.mxu0 0.0
    %346 = vmatpush1.msra.mxu0 0.0
    %347 = vmatprep.subr.mxu0 0.0
    %348 = vmatpush1.msra.mxu0 0.0
    %349 = vmatprep.subr.mxu0 0.0
    %350 = vmatpush1.msra.mxu0 0.0
    %351 = vmatprep.subr.mxu0 0.0
    %352 = vmatpush1.msra.mxu0 0.0
    %353 = vmatprep.subr.mxu0 0.0
    %354 = vmatpush1.msra.mxu0 0.0
    %355 = vmatprep.subr.mxu0 0.0
    %356 = vmatpush1.msra.mxu0 0.0
    %357 = vmatprep.subr.mxu0 0.0
    %358 = vmatpush1.msra.mxu0 0.0
    %359 = vmatprep.subr.mxu0 0.0
    %360 = vmatpush1.msra.mxu0 0.0
    %361 = vmatprep.subr.mxu0 0.0
    %362 = vmatpush1.msra.mxu0 0.0
    %363 = vmatprep.subr.mxu0 0.0
    %364 = vmatpush1.msra.mxu0 0.0
    %365 = vmatprep.subr.mxu0 0.0
    %366 = vmatpush1.msra.mxu0 0.0
    %367 = vmatprep.subr.mxu0 0.0
    %368 = vmatpush1.msra.mxu0 0.0
    %369 = vmatprep.subr.mxu0 0.0
    %370 = vmatpush1.msra.mxu0 0.0
    %371 = vmatprep.mubr.f32.mxu0 0.0
    %372 = vmatmul.mubr.f32.gmra.mrb[0].mxu0 %v305
    %v373 = vpop.f32.mrb[0].mxu0
    %v374 = vadd.f32 0.0, %v373
    %v375 = vpop.f32.mrb[0].mxu0
    %376 = vdwg.mxu0
    %v377 = vadd.f32 %v301, %v374
    %v378 = vxor.u32 %v377, 2147483648
    %v379 = vmul.f32 %v378, 1.442695
    %v380 = vpow.pop %v379
    %v381 = vadd.f32 %v380, 1.0
    %v382 = vrcp.pop %v381
    %v383 = vmul.f32 1.0, %v382
    %v384 = vtanh.pop %v377
    %v385 = vmul.f32 %v383, %v294
    %387 = vrot.lane.b32.xlu0 %v384, 64
    %v388 = vpop.permute.xlu0 %387
    %v390 = vmul.f32 %v383, %v388
    %392 = vrot.lane.b32.xlu0 %v390, 32
    %v393 = vpop.permute.xlu0 %392
    %v395 = vadd.f32 %v385, %v393
    %v396 = vtanh.pop %v395
    %398 = vrot.lane.b32.xlu0 %v396, 64
    %v399 = vpop.permute.xlu0 %398
    %v401 = vmul.f32 %v383, %v399
    %v402 = vld [vmem:[#allocation2 + $0x2] sm:$0x1]
    %404 = vrot.lane.b32.xlu0 %v401, 32
    %v405 = vpop.permute.xlu0 %404
    %v406 = vsel %vm202, %v405, 0
    %408 = vmatprep.subr.mxu0 0.0
    %409 = vmatpush1.msra.mxu0 %v198
    %410 = vmatprep.subr.mxu0 0.0
    %411 = vmatpush1.msra.mxu0 %v199
    %412 = vmatprep.subr.mxu0 0.0
    %413 = vmatpush1.msra.mxu0 %v200
    %414 = vmatprep.subr.mxu0 0.0
    %415 = vmatpush1.msra.mxu0 %v201
    %416 = vmatprep.subr.mxu0 0.0
    %417 = vmatpush1.msra.mxu0 0.0
    %418 = vmatprep.subr.mxu0 0.0
    %419 = vmatpush1.msra.mxu0 0.0
    %420 = vmatprep.subr.mxu0 0.0
    %421 = vmatpush1.msra.mxu0 0.0
    %422 = vmatprep.subr.mxu0 0.0
    %423 = vmatpush1.msra.mxu0 0.0
    %424 = vmatprep.subr.mxu0 0.0
    %425 = vmatpush1.msra.mxu0 0.0
    %426 = vmatprep.subr.mxu0 0.0
    %427 = vmatpush1.msra.mxu0 0.0
    %428 = vmatprep.subr.mxu0 0.0
    %429 = vmatpush1.msra.mxu0 0.0
    %430 = vmatprep.subr.mxu0 0.0
    %431 = vmatpush1.msra.mxu0 0.0
    %432 = vmatprep.subr.mxu0 0.0
    %433 = vmatpush1.msra.mxu0 0.0
    %434 = vmatprep.subr.mxu0 0.0
    %435 = vmatpush1.msra.mxu0 0.0
    %436 = vmatprep.subr.mxu0 0.0
    %437 = vmatpush1.msra.mxu0 0.0
    %438 = vmatprep.subr.mxu0 0.0
    %439 = vmatpush1.msra.mxu0 0.0
    %440 = vmatprep.subr.mxu0 0.0
    %441 = vmatpush1.msra.mxu0 0.0
    %442 = vmatprep.subr.mxu0 0.0
    %443 = vmatpush1.msra.mxu0 0.0
    %444 = vmatprep.subr.mxu0 0.0
    %445 = vmatpush1.msra.mxu0 0.0
    %446 = vmatprep.subr.mxu0 0.0
    %447 = vmatpush1.msra.mxu0 0.0
    %448 = vmatprep.subr.mxu0 0.0
    %449 = vmatpush1.msra.mxu0 0.0
    %450 = vmatprep.subr.mxu0 0.0
    %451 = vmatpush1.msra.mxu0 0.0
    %452 = vmatprep.subr.mxu0 0.0
    %453 = vmatpush1.msra.mxu0 0.0
    %454 = vmatprep.subr.mxu0 0.0
    %455 = vmatpush1.msra.mxu0 0.0
    %456 = vmatprep.subr.mxu0 0.0
    %457 = vmatpush1.msra.mxu0 0.0
    %458 = vmatprep.subr.mxu0 0.0
    %459 = vmatpush1.msra.mxu0 0.0
    %460 = vmatprep.subr.mxu0 0.0
    %461 = vmatpush1.msra.mxu0 0.0
    %462 = vmatprep.subr.mxu0 0.0
    %463 = vmatpush1.msra.mxu0 0.0
    %464 = vmatprep.subr.mxu0 0.0
    %465 = vmatpush1.msra.mxu0 0.0
    %466 = vmatprep.subr.mxu0 0.0
    %467 = vmatpush1.msra.mxu0 0.0
    %468 = vmatprep.subr.mxu0 0.0
    %469 = vmatpush1.msra.mxu0 0.0
    %470 = vmatprep.subr.mxu0 0.0
    %471 = vmatpush1.msra.mxu0 0.0
    %472 = vmatprep.mubr.f32.mxu0 0.0
    %473 = vmatmul.mubr.f32.gmra.mrb[0].mxu0 %v406
    %v474 = vpop.f32.mrb[0].mxu0
    %v475 = vadd.f32 0.0, %v474
    %v476 = vpop.f32.mrb[0].mxu0
    %477 = vdwg.mxu0
    %v478 = vadd.f32 %v402, %v475
    %v479 = vxor.u32 %v478, 2147483648
    %v480 = vmul.f32 %v479, 1.442695
    %v481 = vpow.pop %v480
    %v482 = vadd.f32 %v481, 1.0
    %v483 = vrcp.pop %v482
    %v484 = vmul.f32 1.0, %v483
    %v485 = vtanh.pop %v478
    %v486 = vmul.f32 %v484, %v395
    %488 = vrot.lane.b32.xlu0 %v485, 64
    %v489 = vpop.permute.xlu0 %488
    %v491 = vmul.f32 %v484, %v489
    %493 = vrot.lane.b32.xlu0 %v491, 32
    %v494 = vpop.permute.xlu0 %493
    %v496 = vadd.f32 %v486, %v494
    %v497 = vtanh.pop %v496
    %499 = vrot.lane.b32.xlu0 %v497, 64
    %v500 = vpop.permute.xlu0 %499
    %v502 = vmul.f32 %v484, %v500
    %v503 = vld [vmem:[#allocation2 + $0x3] sm:$0x1]
    %505 = vrot.lane.b32.xlu0 %v502, 32
    %v506 = vpop.permute.xlu0 %505
    %v507 = vsel %vm202, %v506, 0
    %509 = vmatprep.subr.mxu0 0.0
    %510 = vmatpush1.msra.mxu0 %v198
    %511 = vmatprep.subr.mxu0 0.0
    %512 = vmatpush1.msra.mxu0 %v199
    %513 = vmatprep.subr.mxu0 0.0
    %514 = vmatpush1.msra.mxu0 %v200
    %515 = vmatprep.subr.mxu0 0.0
    %516 = vmatpush1.msra.mxu0 %v201
    %517 = vmatprep.subr.mxu0 0.0
    %518 = vmatpush1.msra.mxu0 0.0
    %519 = vmatprep.subr.mxu0 0.0
    %520 = vmatpush1.msra.mxu0 0.0
    %521 = vmatprep.subr.mxu0 0.0
    %522 = vmatpush1.msra.mxu0 0.0
    %523 = vmatprep.subr.mxu0 0.0
    %524 = vmatpush1.msra.mxu0 0.0
    %525 = vmatprep.subr.mxu0 0.0
    %526 = vmatpush1.msra.mxu0 0.0
    %527 = vmatprep.subr.mxu0 0.0
    %528 = vmatpush1.msra.mxu0 0.0
    %529 = vmatprep.subr.mxu0 0.0
    %530 = vmatpush1.msra.mxu0 0.0
    %531 = vmatprep.subr.mxu0 0.0
    %532 = vmatpush1.msra.mxu0 0.0
    %533 = vmatprep.subr.mxu0 0.0
    %534 = vmatpush1.msra.mxu0 0.0
    %535 = vmatprep.subr.mxu0 0.0
    %536 = vmatpush1.msra.mxu0 0.0
    %537 = vmatprep.subr.mxu0 0.0
    %538 = vmatpush1.msra.mxu0 0.0
    %539 = vmatprep.subr.mxu0 0.0
    %540 = vmatpush1.msra.mxu0 0.0
    %541 = vmatprep.subr.mxu0 0.0
    %542 = vmatpush1.msra.mxu0 0.0
    %543 = vmatprep.subr.mxu0 0.0
    %544 = vmatpush1.msra.mxu0 0.0
    %545 = vmatprep.subr.mxu0 0.0
    %546 = vmatpush1.msra.mxu0 0.0
    %547 = vmatprep.subr.mxu0 0.0
    %548 = vmatpush1.msra.mxu0 0.0
    %549 = vmatprep.subr.mxu0 0.0
    %550 = vmatpush1.msra.mxu0 0.0
    %551 = vmatprep.subr.mxu0 0.0
    %552 = vmatpush1.msra.mxu0 0.0
    %553 = vmatprep.subr.mxu0 0.0
    %554 = vmatpush1.msra.mxu0 0.0
    %555 = vmatprep.subr.mxu0 0.0
    %556 = vmatpush1.msra.mxu0 0.0
    %557 = vmatprep.subr.mxu0 0.0
    %558 = vmatpush1.msra.mxu0 0.0
    %559 = vmatprep.subr.mxu0 0.0
    %560 = vmatpush1.msra.mxu0 0.0
    %561 = vmatprep.subr.mxu0 0.0
    %562 = vmatpush1.msra.mxu0 0.0
    %563 = vmatprep.subr.mxu0 0.0
    %564 = vmatpush1.msra.mxu0 0.0
    %565 = vmatprep.subr.mxu0 0.0
    %566 = vmatpush1.msra.mxu0 0.0
    %567 = vmatprep.subr.mxu0 0.0
    %568 = vmatpush1.msra.mxu0 0.0
    %569 = vmatprep.subr.mxu0 0.0
    %570 = vmatpush1.msra.mxu0 0.0
    %571 = vmatprep.subr.mxu0 0.0
    %572 = vmatpush1.msra.mxu0 0.0
    %573 = vmatprep.mubr.f32.mxu0 0.0
    %574 = vmatmul.mubr.f32.gmra.mrb[0].mxu0 %v507
    %v575 = vpop.f32.mrb[0].mxu0
    %v576 = vadd.f32 0.0, %v575
    %v577 = vpop.f32.mrb[0].mxu0
    %578 = vdwg.mxu0
    %v579 = vadd.f32 %v503, %v576
    %v580 = vxor.u32 %v579, 2147483648
    %v581 = vmul.f32 %v580, 1.442695
    %v582 = vpow.pop %v581
    %v583 = vadd.f32 %v582, 1.0
    %v584 = vrcp.pop %v583
    %v585 = vmul.f32 1.0, %v584
    %v586 = vtanh.pop %v579
    %v587 = vmul.f32 %v585, %v496
    %589 = vrot.lane.b32.xlu0 %v586, 64
    %v590 = vpop.permute.xlu0 %589
    %v592 = vmul.f32 %v585, %v590
    %594 = vrot.lane.b32.xlu0 %v592, 32
    %v595 = vpop.permute.xlu0 %594
    %v597 = vadd.f32 %v587, %v595
    %v598 = vtanh.pop %v597
    %600 = vrot.lane.b32.xlu0 %v598, 64
    %v601 = vpop.permute.xlu0 %600
    %v603 = vmul.f32 %v585, %v601
    %v604 = vld [vmem:[#allocation2 + $0x4] sm:$0x1]
    %606 = vrot.lane.b32.xlu0 %v603, 32
    %v607 = vpop.permute.xlu0 %606
    %v608 = vsel %vm202, %v607, 0
    %610 = vmatprep.subr.mxu0 0.0
    %611 = vmatpush1.msra.mxu0 %v198
    %612 = vmatprep.subr.mxu0 0.0
    %613 = vmatpush1.msra.mxu0 %v199
    %614 = vmatprep.subr.mxu0 0.0
    %615 = vmatpush1.msra.mxu0 %v200
    %616 = vmatprep.subr.mxu0 0.0
    %617 = vmatpush1.msra.mxu0 %v201
    %618 = vmatprep.subr.mxu0 0.0
    %619 = vmatpush1.msra.mxu0 0.0
    %620 = vmatprep.subr.mxu0 0.0
    %621 = vmatpush1.msra.mxu0 0.0
    %622 = vmatprep.subr.mxu0 0.0
    %623 = vmatpush1.msra.mxu0 0.0
    %624 = vmatprep.subr.mxu0 0.0
    %625 = vmatpush1.msra.mxu0 0.0
    %626 = vmatprep.subr.mxu0 0.0
    %627 = vmatpush1.msra.mxu0 0.0
    %628 = vmatprep.subr.mxu0 0.0
    %629 = vmatpush1.msra.mxu0 0.0
    %630 = vmatprep.subr.mxu0 0.0
    %631 = vmatpush1.msra.mxu0 0.0
    %632 = vmatprep.subr.mxu0 0.0
    %633 = vmatpush1.msra.mxu0 0.0
    %634 = vmatprep.subr.mxu0 0.0
    %635 = vmatpush1.msra.mxu0 0.0
    %636 = vmatprep.subr.mxu0 0.0
    %637 = vmatpush1.msra.mxu0 0.0
    %638 = vmatprep.subr.mxu0 0.0
    %639 = vmatpush1.msra.mxu0 0.0
    %640 = vmatprep.subr.mxu0 0.0
    %641 = vmatpush1.msra.mxu0 0.0
    %642 = vmatprep.subr.mxu0 0.0
    %643 = vmatpush1.msra.mxu0 0.0
    %644 = vmatprep.subr.mxu0 0.0
    %645 = vmatpush1.msra.mxu0 0.0
    %646 = vmatprep.subr.mxu0 0.0
    %647 = vmatpush1.msra.mxu0 0.0
    %648 = vmatprep.subr.mxu0 0.0
    %649 = vmatpush1.msra.mxu0 0.0
    %650 = vmatprep.subr.mxu0 0.0
    %651 = vmatpush1.msra.mxu0 0.0
    %652 = vmatprep.subr.mxu0 0.0
    %653 = vmatpush1.msra.mxu0 0.0
    %654 = vmatprep.subr.mxu0 0.0
    %655 = vmatpush1.msra.mxu0 0.0
    %656 = vmatprep.subr.mxu0 0.0
    %657 = vmatpush1.msra.mxu0 0.0
    %658 = vmatprep.subr.mxu0 0.0
    %659 = vmatpush1.msra.mxu0 0.0
    %660 = vmatprep.subr.mxu0 0.0
    %661 = vmatpush1.msra.mxu0 0.0
    %662 = vmatprep.subr.mxu0 0.0
    %663 = vmatpush1.msra.mxu0 0.0
    %664 = vmatprep.subr.mxu0 0.0
    %665 = vmatpush1.msra.mxu0 0.0
    %666 = vmatprep.subr.mxu0 0.0
    %667 = vmatpush1.msra.mxu0 0.0
    %668 = vmatprep.subr.mxu0 0.0
    %669 = vmatpush1.msra.mxu0 0.0
    %670 = vmatprep.subr.mxu0 0.0
    %671 = vmatpush1.msra.mxu0 0.0
    %672 = vmatprep.subr.mxu0 0.0
    %673 = vmatpush1.msra.mxu0 0.0
    %674 = vmatprep.mubr.f32.mxu0 0.0
    %675 = vmatmul.mubr.f32.gmra.mrb[0].mxu0 %v608
    %v676 = vpop.f32.mrb[0].mxu0
    %v677 = vadd.f32 0.0, %v676
    %v678 = vpop.f32.mrb[0].mxu0
    %679 = vdwg.mxu0
    %v680 = vadd.f32 %v604, %v677
    %v681 = vxor.u32 %v680, 2147483648
    %v682 = vmul.f32 %v681, 1.442695
    %v683 = vpow.pop %v682
    %v684 = vadd.f32 %v683, 1.0
    %v685 = vrcp.pop %v684
    %v686 = vmul.f32 1.0, %v685
    %v687 = vtanh.pop %v680
    %v688 = vmul.f32 %v686, %v597
    %690 = vrot.lane.b32.xlu0 %v687, 64
    %v691 = vpop.permute.xlu0 %690
    %v693 = vmul.f32 %v686, %v691
    %695 = vrot.lane.b32.xlu0 %v693, 32
    %v696 = vpop.permute.xlu0 %695
    %v698 = vadd.f32 %v688, %v696
    %v699 = vtanh.pop %v698
    %701 = vrot.lane.b32.xlu0 %v699, 64
    %v702 = vpop.permute.xlu0 %701
    %v704 = vmul.f32 %v686, %v702
    %v705 = vld [vmem:[#allocation2 + $0x5] sm:$0x1]
    %707 = vrot.lane.b32.xlu0 %v704, 32
    %v708 = vpop.permute.xlu0 %707
    %v709 = vsel %vm202, %v708, 0
    %711 = vmatprep.subr.mxu0 0.0
    %712 = vmatpush1.msra.mxu0 %v198
    %713 = vmatprep.subr.mxu0 0.0
    %714 = vmatpush1.msra.mxu0 %v199
    %715 = vmatprep.subr.mxu0 0.0
    %716 = vmatpush1.msra.mxu0 %v200
    %717 = vmatprep.subr.mxu0 0.0
    %718 = vmatpush1.msra.mxu0 %v201
    %719 = vmatprep.subr.mxu0 0.0
    %720 = vmatpush1.msra.mxu0 0.0
    %721 = vmatprep.subr.mxu0 0.0
    %722 = vmatpush1.msra.mxu0 0.0
    %723 = vmatprep.subr.mxu0 0.0
    %724 = vmatpush1.msra.mxu0 0.0
    %725 = vmatprep.subr.mxu0 0.0
    %726 = vmatpush1.msra.mxu0 0.0
    %727 = vmatprep.subr.mxu0 0.0
    %728 = vmatpush1.msra.mxu0 0.0
    %729 = vmatprep.subr.mxu0 0.0
    %730 = vmatpush1.msra.mxu0 0.0
    %731 = vmatprep.subr.mxu0 0.0
    %732 = vmatpush1.msra.mxu0 0.0
    %733 = vmatprep.subr.mxu0 0.0
    %734 = vmatpush1.msra.mxu0 0.0
    %735 = vmatprep.subr.mxu0 0.0
    %736 = vmatpush1.msra.mxu0 0.0
    %737 = vmatprep.subr.mxu0 0.0
    %738 = vmatpush1.msra.mxu0 0.0
    %739 = vmatprep.subr.mxu0 0.0
    %740 = vmatpush1.msra.mxu0 0.0
    %741 = vmatprep.subr.mxu0 0.0
    %742 = vmatpush1.msra.mxu0 0.0
    %743 = vmatprep.subr.mxu0 0.0
    %744 = vmatpush1.msra.mxu0 0.0
    %745 = vmatprep.subr.mxu0 0.0
    %746 = vmatpush1.msra.mxu0 0.0
    %747 = vmatprep.subr.mxu0 0.0
    %748 = vmatpush1.msra.mxu0 0.0
    %749 = vmatprep.subr.mxu0 0.0
    %750 = vmatpush1.msra.mxu0 0.0
    %751 = vmatprep.subr.mxu0 0.0
    %752 = vmatpush1.msra.mxu0 0.0
    %753 = vmatprep.subr.mxu0 0.0
    %754 = vmatpush1.msra.mxu0 0.0
    %755 = vmatprep.subr.mxu0 0.0
    %756 = vmatpush1.msra.mxu0 0.0
    %757 = vmatprep.subr.mxu0 0.0
    %758 = vmatpush1.msra.mxu0 0.0
    %759 = vmatprep.subr.mxu0 0.0
    %760 = vmatpush1.msra.mxu0 0.0
    %761 = vmatprep.subr.mxu0 0.0
    %762 = vmatpush1.msra.mxu0 0.0
    %763 = vmatprep.subr.mxu0 0.0
    %764 = vmatpush1.msra.mxu0 0.0
    %765 = vmatprep.subr.mxu0 0.0
    %766 = vmatpush1.msra.mxu0 0.0
    %767 = vmatprep.subr.mxu0 0.0
    %768 = vmatpush1.msra.mxu0 0.0
    %769 = vmatprep.subr.mxu0 0.0
    %770 = vmatpush1.msra.mxu0 0.0
    %771 = vmatprep.subr.mxu0 0.0
    %772 = vmatpush1.msra.mxu0 0.0
    %773 = vmatprep.subr.mxu0 0.0
    %774 = vmatpush1.msra.mxu0 0.0
    %775 = vmatprep.mubr.f32.mxu0 0.0
    %776 = vmatmul.mubr.f32.gmra.mrb[0].mxu0 %v709
    %v777 = vpop.f32.mrb[0].mxu0
    %v778 = vadd.f32 0.0, %v777
    %v779 = vpop.f32.mrb[0].mxu0
    %780 = vdwg.mxu0
    %v781 = vadd.f32 %v705, %v778
    %v782 = vxor.u32 %v781, 2147483648
    %v783 = vmul.f32 %v782, 1.442695
    %v784 = vpow.pop %v783
    %v785 = vadd.f32 %v784, 1.0
    %v786 = vrcp.pop %v785
    %v787 = vmul.f32 1.0, %v786
    %v788 = vtanh.pop %v781
    %v789 = vmul.f32 %v787, %v698
    %791 = vrot.lane.b32.xlu0 %v788, 64
    %v792 = vpop.permute.xlu0 %791
    %v794 = vmul.f32 %v787, %v792
    %796 = vrot.lane.b32.xlu0 %v794, 32
    %v797 = vpop.permute.xlu0 %796
    %v799 = vadd.f32 %v789, %v797
    %v800 = vtanh.pop %v799
    %802 = vrot.lane.b32.xlu0 %v800, 64
    %v803 = vpop.permute.xlu0 %802
    %v805 = vmul.f32 %v787, %v803
    %v806 = vld [vmem:[#allocation2 + $0x6] sm:$0x1]
    %808 = vrot.lane.b32.xlu0 %v805, 32
    %v809 = vpop.permute.xlu0 %808
    %v810 = vsel %vm202, %v809, 0
    %812 = vmatprep.subr.mxu0 0.0
    %813 = vmatpush1.msra.mxu0 %v198
    %814 = vmatprep.subr.mxu0 0.0
    %815 = vmatpush1.msra.mxu0 %v199
    %816 = vmatprep.subr.mxu0 0.0
    %817 = vmatpush1.msra.mxu0 %v200
    %818 = vmatprep.subr.mxu0 0.0
    %819 = vmatpush1.msra.mxu0 %v201
    %820 = vmatprep.subr.mxu0 0.0
    %821 = vmatpush1.msra.mxu0 0.0
    %822 = vmatprep.subr.mxu0 0.0
    %823 = vmatpush1.msra.mxu0 0.0
    %824 = vmatprep.subr.mxu0 0.0
    %825 = vmatpush1.msra.mxu0 0.0
    %826 = vmatprep.subr.mxu0 0.0
    %827 = vmatpush1.msra.mxu0 0.0
    %828 = vmatprep.subr.mxu0 0.0
    %829 = vmatpush1.msra.mxu0 0.0
    %830 = vmatprep.subr.mxu0 0.0
    %831 = vmatpush1.msra.mxu0 0.0
    %832 = vmatprep.subr.mxu0 0.0
    %833 = vmatpush1.msra.mxu0 0.0
    %834 = vmatprep.subr.mxu0 0.0
    %835 = vmatpush1.msra.mxu0 0.0
    %836 = vmatprep.subr.mxu0 0.0
    %837 = vmatpush1.msra.mxu0 0.0
    %838 = vmatprep.subr.mxu0 0.0
    %839 = vmatpush1.msra.mxu0 0.0
    %840 = vmatprep.subr.mxu0 0.0
    %841 = vmatpush1.msra.mxu0 0.0
    %842 = vmatprep.subr.mxu0 0.0
    %843 = vmatpush1.msra.mxu0 0.0
    %844 = vmatprep.subr.mxu0 0.0
    %845 = vmatpush1.msra.mxu0 0.0
    %846 = vmatprep.subr.mxu0 0.0
    %847 = vmatpush1.msra.mxu0 0.0
    %848 = vmatprep.subr.mxu0 0.0
    %849 = vmatpush1.msra.mxu0 0.0
    %850 = vmatprep.subr.mxu0 0.0
    %851 = vmatpush1.msra.mxu0 0.0
    %852 = vmatprep.subr.mxu0 0.0
    %853 = vmatpush1.msra.mxu0 0.0
    %854 = vmatprep.subr.mxu0 0.0
    %855 = vmatpush1.msra.mxu0 0.0
    %856 = vmatprep.subr.mxu0 0.0
    %857 = vmatpush1.msra.mxu0 0.0
    %858 = vmatprep.subr.mxu0 0.0
    %859 = vmatpush1.msra.mxu0 0.0
    %860 = vmatprep.subr.mxu0 0.0
    %861 = vmatpush1.msra.mxu0 0.0
    %862 = vmatprep.subr.mxu0 0.0
    %863 = vmatpush1.msra.mxu0 0.0
    %864 = vmatprep.subr.mxu0 0.0
    %865 = vmatpush1.msra.mxu0 0.0
    %866 = vmatprep.subr.mxu0 0.0
    %867 = vmatpush1.msra.mxu0 0.0
    %868 = vmatprep.subr.mxu0 0.0
    %869 = vmatpush1.msra.mxu0 0.0
    %870 = vmatprep.subr.mxu0 0.0
    %871 = vmatpush1.msra.mxu0 0.0
    %872 = vmatprep.subr.mxu0 0.0
    %873 = vmatpush1.msra.mxu0 0.0
    %874 = vmatprep.subr.mxu0 0.0
    %875 = vmatpush1.msra.mxu0 0.0
    %876 = vmatprep.mubr.f32.mxu0 0.0
    %877 = vmatmul.mubr.f32.gmra.mrb[0].mxu0 %v810
    %v878 = vpop.f32.mrb[0].mxu0
    %v879 = vadd.f32 0.0, %v878
    %v880 = vpop.f32.mrb[0].mxu0
    %881 = vdwg.mxu0
    %v882 = vadd.f32 %v806, %v879
    %v883 = vxor.u32 %v882, 2147483648
    %v884 = vmul.f32 %v883, 1.442695
    %v885 = vpow.pop %v884
    %v886 = vadd.f32 %v885, 1.0
    %v887 = vrcp.pop %v886
    %v888 = vmul.f32 1.0, %v887
    %v889 = vtanh.pop %v882
    %v890 = vmul.f32 %v888, %v799
    %892 = vrot.lane.b32.xlu0 %v889, 64
    %v893 = vpop.permute.xlu0 %892
    %v895 = vmul.f32 %v888, %v893
    %897 = vrot.lane.b32.xlu0 %v895, 32
    %v898 = vpop.permute.xlu0 %897
    %v900 = vadd.f32 %v890, %v898
    %v901 = vtanh.pop %v900
    %903 = vrot.lane.b32.xlu0 %v901, 64
    %v904 = vpop.permute.xlu0 %903
    %v906 = vmul.f32 %v888, %v904
    %v907 = vld [vmem:[#allocation2 + $0x7] sm:$0x1]
    %909 = vrot.lane.b32.xlu0 %v906, 32
    %v910 = vpop.permute.xlu0 %909
    %v911 = vsel %vm202, %v910, 0
    %913 = vmatprep.subr.mxu0 0.0
    %914 = vmatpush1.msra.mxu0 %v198
    %915 = vmatprep.subr.mxu0 0.0
    %916 = vmatpush1.msra.mxu0 %v199
    %917 = vmatprep.subr.mxu0 0.0
    %918 = vmatpush1.msra.mxu0 %v200
    %919 = vmatprep.subr.mxu0 0.0
    %920 = vmatpush1.msra.mxu0 %v201
    %921 = vmatprep.subr.mxu0 0.0
    %922 = vmatpush1.msra.mxu0 0.0
    %923 = vmatprep.subr.mxu0 0.0
    %924 = vmatpush1.msra.mxu0 0.0
    %925 = vmatprep.subr.mxu0 0.0
    %926 = vmatpush1.msra.mxu0 0.0
    %927 = vmatprep.subr.mxu0 0.0
    %928 = vmatpush1.msra.mxu0 0.0
    %929 = vmatprep.subr.mxu0 0.0
    %930 = vmatpush1.msra.mxu0 0.0
    %931 = vmatprep.subr.mxu0 0.0
    %932 = vmatpush1.msra.mxu0 0.0
    %933 = vmatprep.subr.mxu0 0.0
    %934 = vmatpush1.msra.mxu0 0.0
    %935 = vmatprep.subr.mxu0 0.0
    %936 = vmatpush1.msra.mxu0 0.0
    %937 = vmatprep.subr.mxu0 0.0
    %938 = vmatpush1.msra.mxu0 0.0
    %939 = vmatprep.subr.mxu0 0.0
    %940 = vmatpush1.msra.mxu0 0.0
    %941 = vmatprep.subr.mxu0 0.0
    %942 = vmatpush1.msra.mxu0 0.0
    %943 = vmatprep.subr.mxu0 0.0
    %944 = vmatpush1.msra.mxu0 0.0
    %945 = vmatprep.subr.mxu0 0.0
    %946 = vmatpush1.msra.mxu0 0.0
    %947 = vmatprep.subr.mxu0 0.0
    %948 = vmatpush1.msra.mxu0 0.0
    %949 = vmatprep.subr.mxu0 0.0
    %950 = vmatpush1.msra.mxu0 0.0
    %951 = vmatprep.subr.mxu0 0.0
    %952 = vmatpush1.msra.mxu0 0.0
    %953 = vmatprep.subr.mxu0 0.0
    %954 = vmatpush1.msra.mxu0 0.0
    %955 = vmatprep.subr.mxu0 0.0
    %956 = vmatpush1.msra.mxu0 0.0
    %957 = vmatprep.subr.mxu0 0.0
    %958 = vmatpush1.msra.mxu0 0.0
    %959 = vmatprep.subr.mxu0 0.0
    %960 = vmatpush1.msra.mxu0 0.0
    %961 = vmatprep.subr.mxu0 0.0
    %962 = vmatpush1.msra.mxu0 0.0
    %963 = vmatprep.subr.mxu0 0.0
    %964 = vmatpush1.msra.mxu0 0.0
    %965 = vmatprep.subr.mxu0 0.0
    %966 = vmatpush1.msra.mxu0 0.0
    %967 = vmatprep.subr.mxu0 0.0
    %968 = vmatpush1.msra.mxu0 0.0
    %969 = vmatprep.subr.mxu0 0.0
    %970 = vmatpush1.msra.mxu0 0.0
    %971 = vmatprep.subr.mxu0 0.0
    %972 = vmatpush1.msra.mxu0 0.0
    %973 = vmatprep.subr.mxu0 0.0
    %974 = vmatpush1.msra.mxu0 0.0
    %975 = vmatprep.subr.mxu0 0.0
    %976 = vmatpush1.msra.mxu0 0.0
    %977 = vmatprep.mubr.f32.mxu0 0.0
    %978 = vmatmul.mubr.f32.gmra.mrb[0].mxu0 %v911
    %v979 = vpop.f32.mrb[0].mxu0
    %v980 = vadd.f32 0.0, %v979
    %v981 = vpop.f32.mrb[0].mxu0
    %982 = vdwg.mxu0
    %v983 = vadd.f32 %v907, %v980
    %v984 = vxor.u32 %v983, 2147483648
    %v985 = vmul.f32 %v984, 1.442695
    %v986 = vpow.pop %v985
    %v987 = vadd.f32 %v986, 1.0
    %v988 = vrcp.pop %v987
    %v989 = vmul.f32 1.0, %v988
    %v990 = vtanh.pop %v983
    %v991 = vmul.f32 %v989, %v900
    %993 = vrot.lane.b32.xlu0 %v990, 64
    %v994 = vpop.permute.xlu0 %993
    %v996 = vmul.f32 %v989, %v994
    %998 = vrot.lane.b32.xlu0 %v996, 32
    %v999 = vpop.permute.xlu0 %998
    %v1001 = vadd.f32 %v991, %v999
    %v1002 = vtanh.pop %v1001
    %1004 = vrot.lane.b32.xlu0 %v1002, 64
    %v1005 = vpop.permute.xlu0 %1004
    %v1007 = vmul.f32 %v989, %v1005
    %v1008 = vrot.slane %v401, 7
    %v1010 = vrot.slane %v502, 6
    %v1012 = vrot.slane %v603, 5
    %v1014 = vrot.slane %v704, 4
    %v1016 = vrot.slane %v805, 3
    %v1018 = vrot.slane %v906, 2
    %v1021 = vrot.slane %v1007, 1
    %v1023 = vsel %vm99, %v300, %v1008
    %v1024 = vsel %vm101, %v1023, %v1010
    %v1025 = vsel %vm103, %v1024, %v1012
    %v1026 = vsel %vm105, %v1025, %v1014
    %v1027 = vsel %vm107, %v1026, %v1016
    %v1028 = vsel %vm109, %v1027, %v1018
    %v1029 = vsel %vm111, %v1028, %v1021
    %v1030 = vld [vmem:[#allocation7] sm:$0xff]
    %v1031 = vld [vmem:[#allocation7 + $0x8] sm:$0xff]
    %v1032 = vld [vmem:[#allocation7 + $0x10] sm:$0xff]
    %v1033 = vld [vmem:[#allocation7 + $0x18] sm:$0xff]
    %v1034 = vld [vmem:[%s6] sm:$0x1]
    %v1036 = vlaneseq
    %v1037 = vshrl.u32 %v1036, 7
    %v1038 = vsub.s32 0, %v1037
    %v1039 = vrot.slane %v1034, %v1038
    %1042 = vrot.lane.b32.xlu0 %v1029, 32
    %v1043 = vpop.permute.xlu0 %1042
    %v1044 = vsel %vm202, %v1043, 0
    %1046 = vmatprep.subr.mxu0 0.0
    %1047 = vmatpush1.msra.mxu0 %v1030
    %1048 = vmatprep.subr.mxu0 0.0
    %1049 = vmatpush1.msra.mxu0 %v1031
    %1050 = vmatprep.subr.mxu0 0.0
    %1051 = vmatpush1.msra.mxu0 %v1032
    %1052 = vmatprep.subr.mxu0 0.0
    %1053 = vmatpush1.msra.mxu0 %v1033
    %1054 = vmatprep.subr.mxu0 0.0
    %1055 = vmatpush1.msra.mxu0 0.0
    %1056 = vmatprep.subr.mxu0 0.0
    %1057 = vmatpush1.msra.mxu0 0.0
    %1058 = vmatprep.subr.mxu0 0.0
    %1059 = vmatpush1.msra.mxu0 0.0
    %1060 = vmatprep.subr.mxu0 0.0
    %1061 = vmatpush1.msra.mxu0 0.0
    %1062 = vmatprep.subr.mxu0 0.0
    %1063 = vmatpush1.msra.mxu0 0.0
    %1064 = vmatprep.subr.mxu0 0.0
    %1065 = vmatpush1.msra.mxu0 0.0
    %1066 = vmatprep.subr.mxu0 0.0
    %1067 = vmatpush1.msra.mxu0 0.0
    %1068 = vmatprep.subr.mxu0 0.0
    %1069 = vmatpush1.msra.mxu0 0.0
    %1070 = vmatprep.subr.mxu0 0.0
    %1071 = vmatpush1.msra.mxu0 0.0
    %1072 = vmatprep.subr.mxu0 0.0
    %1073 = vmatpush1.msra.mxu0 0.0
    %1074 = vmatprep.subr.mxu0 0.0
    %1075 = vmatpush1.msra.mxu0 0.0
    %1076 = vmatprep.subr.mxu0 0.0
    %1077 = vmatpush1.msra.mxu0 0.0
    %1078 = vmatprep.subr.mxu0 0.0
    %1079 = vmatpush1.msra.mxu0 0.0
    %1080 = vmatprep.subr.mxu0 0.0
    %1081 = vmatpush1.msra.mxu0 0.0
    %1082 = vmatprep.subr.mxu0 0.0
    %1083 = vmatpush1.msra.mxu0 0.0
    %1084 = vmatprep.subr.mxu0 0.0
    %1085 = vmatpush1.msra.mxu0 0.0
    %1086 = vmatprep.subr.mxu0 0.0
    %1087 = vmatpush1.msra.mxu0 0.0
    %1088 = vmatprep.subr.mxu0 0.0
    %1089 = vmatpush1.msra.mxu0 0.0
    %1090 = vmatprep.subr.mxu0 0.0
    %1091 = vmatpush1.msra.mxu0 0.0
    %1092 = vmatprep.subr.mxu0 0.0
    %1093 = vmatpush1.msra.mxu0 0.0
    %1094 = vmatprep.subr.mxu0 0.0
    %1095 = vmatpush1.msra.mxu0 0.0
    %1096 = vmatprep.subr.mxu0 0.0
    %1097 = vmatpush1.msra.mxu0 0.0
    %1098 = vmatprep.subr.mxu0 0.0
    %1099 = vmatpush1.msra.mxu0 0.0
    %1100 = vmatprep.subr.mxu0 0.0
    %1101 = vmatpush1.msra.mxu0 0.0
    %1102 = vmatprep.subr.mxu0 0.0
    %1103 = vmatpush1.msra.mxu0 0.0
    %1104 = vmatprep.subr.mxu0 0.0
    %1105 = vmatpush1.msra.mxu0 0.0
    %1106 = vmatprep.subr.mxu0 0.0
    %1107 = vmatpush1.msra.mxu0 0.0
    %1108 = vmatprep.subr.mxu0 0.0
    %1109 = vmatpush1.msra.mxu0 0.0
    %1110 = vmatprep.mubr.f32.mxu0 0.0
    %1111 = vmatmul.mubr.f32.gmra.mrb[0].mxu0 %v1044
    %v1112 = vpop.f32.mrb[0].mxu0
    %v1113 = vadd.f32 %v1039, %v1112
    %v1114 = vpop.f32.mrb[0].mxu0
    %1115 = vdwg.mxu0
    %1116 = vst [vmem:[#allocation8] sm:$0xff] %v1113
    // Predicated region
    $region38: #{tpu_custom_call.1} parent=1 // pred_check
      _
    $region39: #{tpu_custom_call.1} parent=1 // pred_check_branch
      %1118 = sbr.rel (0) target = $region41
    $region40: #{tpu_custom_call.1} parent=1 // pred_region
      %s1120 = ssub.s32 128, 128
      %1121 = vsyncadd [#allocation5], %s1120
      %s1123 = sshll.u32 [#allocation8], 4
      %s1124 = int_to_ptr.vmem [resolvable:$true] %s1123
      %1126 = dma.vmem_to_hbm [thread:$0]  %s1124, 128, %s7, [#allocation5]
    $region41: #{tpu_custom_call.1} parent=1 // pred_fallthru
      _
    // Predicated region
    $region42: #{tpu_custom_call.1} parent=1 // pred_check
      _
    $region43: #{tpu_custom_call.1} parent=1 // pred_check_branch
      %1128 = sbr.rel (0) target = $region45
    $region44: #{tpu_custom_call.1} parent=1 // pred_region
      %1129 = dma.done [#allocation5], 128
    $region45: #{tpu_custom_call.1} parent=1 // pred_fallthru
      _
    %1130 = vsyncpa [#allocation4], 1
    %1131 = vsyncpa [#allocation5], 1
    %1132 = vsyncpa [#allocation6], 1

</llo_original>
